<compile_context>
chip_gen: v5e
topology: v5e:2x2
jax: 0.10.0
libtpu: 0.0.40
codegen_flags: <defaults>
</compile_context>

<pallas_src>
import jax
import jax.numpy as jnp
from jax.experimental import pallas as pl
from jax.experimental.pallas import tpu as pltpu


THRESHOLD = 1e-07
VALUE = 0.0


def _threshold_kernel(y_ref, o_ref):
    y = y_ref[...]
    # Compare in f32 ("opmath") for reduced-precision dtypes; predicate is
    # `y <= threshold ? value : y` so NaN is preserved (matches PyTorch).
    yc = y if y.dtype == jnp.float32 else y.astype(jnp.float32)
    o_ref[...] = jnp.where(yc <= jnp.float32(THRESHOLD),
                           jnp.asarray(VALUE, y.dtype), y)


def _default_block_bytes() -> int:
    try:
        kind = jax.devices()[0].device_kind.lower()
    except Exception:
        kind = ""
    # v6e / v7x: 32 MiB default scoped VMEM -> 4 MiB blocks (2 arrays x 2 bufs
    # = 16 MiB).  v5e (16 MiB scoped) and anything else: stay at 2 MiB.
    if "v6" in kind or "v7" in kind:
        return 4 * 1024 * 1024
    return 2 * 1024 * 1024


def threshold_forward(y: jax.Array, *, target_block_bytes: int | None = None,
                      donate_input: bool = False) -> jax.Array:
    """Elementwise threshold: 0 where y <= 1e-7 else y (NaN preserved)."""
    orig_shape = y.shape
    dtype = y.dtype
    total = int(y.size)
    if total == 0:
        return y

    itemsize = jnp.dtype(dtype).itemsize
    # Sublane packing multiple: 8 for 4-byte, 16 for 2-byte, 32 for 1-byte.
    sub = max(8, 32 // max(itemsize, 1))

    if target_block_bytes is None:
        target_block_bytes = _default_block_bytes()

    compiler_params = pltpu.CompilerParams(dimension_semantics=("parallel",))
    io_alias = {0: 0} if donate_input else {}

    if total % 128 == 0:
        # ---------- fast path: lane-dense 2-D slab, no padding -------------
        lanes = 128
        for cand in (1024, 512, 256):
            if total % cand == 0:
                lanes = cand
                break
        rows = total // lanes
        y2d = y.reshape(rows, lanes)

        block_rows = max(sub, (target_block_bytes // (lanes * itemsize)) // sub * sub)
        if rows <= block_rows:
            slab_bytes = rows * lanes * itemsize
            if slab_bytes > 256 * 1024 and rows > sub:
                # >=2 (even) grid steps: overlap prefetch(i+1) with writeback(i),
                # and let v7x's two TensorCores split the axis.
                steps = 4 if rows >= 4 * sub else 2
                block_rows = max(sub, pl.cdiv(pl.cdiv(rows, steps), sub) * sub)
            else:
                block_rows = rows  # tiny tensor: full-extent block
        grid = (pl.cdiv(rows, block_rows),)

        out2d = pl.pallas_call(
            _threshold_kernel,
            out_shape=jax.ShapeDtypeStruct((rows, lanes), dtype),
            grid_spec=pltpu.PrefetchScalarGridSpec(
                num_scalar_prefetch=0,
                grid=grid,
                in_specs=[pl.BlockSpec((block_rows, lanes), lambda i: (i, 0))],
                out_specs=pl.BlockSpec((block_rows, lanes), lambda i: (i, 0)),
            ),
            input_output_aliases=io_alias,
            compiler_params=compiler_params,
        )(y2d)
        return out2d.reshape(orig_shape)

    # ---------- ragged path: 1-D kernel over the whole flat buffer ---------
    # No pad / slice / concat round trips.  Block length is a multiple of
    # sub*128; the final partial block uses Pallas's masked OOB writes.
    y1d = y.reshape(total)
    unit = sub * 128
    blk = max(unit, (target_block_bytes // itemsize) // unit * unit)
    if total <= blk:
        if total * itemsize > 256 * 1024 and total > unit:
            blk = max(unit, pl.cdiv(pl.cdiv(total, 2), unit) * unit)
        else:
            blk = total  # full-extent block: allowed for any length
    grid = (pl.cdiv(total, blk),)

    out1d = pl.pallas_call(
        _threshold_kernel,
        out_shape=jax.ShapeDtypeStruct((total,), dtype),
        grid_spec=pltpu.PrefetchScalarGridSpec(
            num_scalar_prefetch=0,
            grid=grid,
            in_specs=[pl.BlockSpec((blk,), lambda i: (i,))],
            out_specs=pl.BlockSpec((blk,), lambda i: (i,)),
        ),
        input_output_aliases=io_alias,
        compiler_params=compiler_params,
    )(y1d)
    return out1d.reshape(orig_shape)


def _ref_threshold(x):
    xc = x if x.dtype == jnp.float32 else x.astype(jnp.float32)
    return jnp.where(xc <= jnp.float32(THRESHOLD), jnp.asarray(VALUE, x.dtype), x)


def _same(a, b):
    # Elementwise equal, treating NaN==NaN as equal.
    return bool(jnp.all((a == b) | (jnp.isnan(a) & jnp.isnan(b))))


if __name__ == "__main__":
    key = jax.random.PRNGKey(0)

    # 1) Primary test: NCHW activation tensor (fast 2-D path).
    x = jax.random.normal(key, (2, 4, 16, 16), dtype=jnp.float32)
    # Values around the threshold + a NaN to exercise the predicate direction.
    x = x.at[0, 0, 0, :4].set(jnp.array([5e-8, 1e-7, 2e-7, -1e-7], jnp.float32))
    x = x.at[0, 0, 0, 4].set(jnp.nan)

    out = jax.block_until_ready(threshold_forward(x))
    assert out.shape == x.shape and out.dtype == x.dtype
    assert bool(jnp.isnan(out[0, 0, 0, 4]))           # NaN preserved (PyTorch semantics)
    assert _same(out, _ref_threshold(x))

    # 2) Ragged size (105 elements): 1-D path, single full-extent block.
    x2 = jax.random.normal(jax.random.PRNGKey(1), (3, 5, 7), dtype=jnp.float32)
    out2 = jax.block_until_ready(threshold_forward(x2))
    assert _same(out2, _ref_threshold(x2))

    # 3) Ragged size with a forced multi-block grid (partial last block).
    x3 = jax.random.normal(jax.random.PRNGKey(2), (30, 40), dtype=jnp.float32)
    out3 = jax.block_until_ready(threshold_forward(x3, target_block_bytes=4096))
    assert _same(out3, _ref_threshold(x3))

    # 4) bf16 input: compare done in f32 opmath, storage stays bf16.
    x4 = jax.random.normal(jax.random.PRNGKey(3), (2, 128), dtype=jnp.bfloat16)
    out4 = jax.block_until_ready(threshold_forward(x4))
    assert out4.dtype == jnp.bfloat16
    assert _same(out4, _ref_threshold(x4))

    print("KERNEL_OK")
</pallas_src>

<mosaic_0001>
module attributes {stable_mosaic.version = 11 : i64} {
  func.func @_threshold_kernel(%arg0: i32, %arg1: memref<2x1024xf32, #tpu.memory_space<vmem>>, %arg2: memref<2x1024xf32, #tpu.memory_space<vmem>>) attributes {dimension_semantics = [#tpu.dimension_semantics<parallel>], iteration_bounds = array<i64: 1>, scalar_prefetch = 0 : i64, scratch_operands = 0 : i64, tpu.core_type = #tpu.core_type<tc>, window_params = [{transform_indices = @transform_0, window_bounds = array<i64: 2, 1024>}, {transform_indices = @transform_1, window_bounds = array<i64: 2, 1024>}]} {
    %c0 = arith.constant 0 : index
    %c0_0 = arith.constant 0 : index
    %0 = vector.load %arg1[%c0, %c0_0] : memref<2x1024xf32, #tpu.memory_space<vmem>>, vector<2x1024xf32>
    %cst = arith.constant 1.000000e-07 : f32
    %1 = vector.broadcast %cst : f32 to vector<2x1024xf32>
    %2 = arith.cmpf ole, %0, %1 : vector<2x1024xf32>
    %cst_1 = arith.constant 0.000000e+00 : f32
    %3 = vector.broadcast %cst_1 : f32 to vector<2x1024xf32>
    %4 = arith.select %2, %3, %0 : vector<2x1024xi1>, vector<2x1024xf32>
    %c0_2 = arith.constant 0 : index
    %c0_3 = arith.constant 0 : index
    %5 = vector.load %arg2[%c0_2, %c0_3] : memref<2x1024xf32, #tpu.memory_space<vmem>>, vector<2x1024xf32>
    tpu.vector_store %arg2[%c0_2, %c0_3], %4 {strides = array<i32>} : memref<2x1024xf32, #tpu.memory_space<vmem>>, vector<2x1024xf32>,
    return
  }
  func.func @transform_0(%arg0: i32) -> (i32, i32) {
    %c0_i32 = arith.constant 0 : i32
    %c0_i32_0 = arith.constant 0 : i32
    return %arg0, %c0_i32 : i32, i32
  }
  func.func @transform_1(%arg0: i32) -> (i32, i32) {
    %c0_i32 = arith.constant 0 : i32
    %c0_i32_0 = arith.constant 0 : i32
    return %arg0, %c0_i32 : i32, i32
  }
}

</mosaic_0001>

<llo_original>
// kernel: tpu_custom_call.1
$region0: #{tpu_custom_call.1}
  #allocation0 [shape = 'u32[]', space=smem, size = 0x4, offset = 0x4, fixed_abs, tag = 'smem constant byte address 0x4 - core index']
  #allocation1 [shape = 'u32[72,128]{1,0:T(1,128)}', space=vmem, size = 0x9000, scoped, tag = 'internal scratch']
  %s0 = inlined_call_operand.hbm [shape: f32[2,1024], index: 0, kind: input, shape index: {}]
  %s1 = inlined_call_operand.hbm [shape: f32[2,1024], index: 1, kind: output, shape index: {}]
  %s2 = sld [smem:[#allocation0]]
  $region18: #{tpu_custom_call.1} parent=0
    _
  %s4 = ssub.s32 1, %s2
  %s5 = scalar_select 0, %s4, %s2
  $region1: #{tpu_custom_call.1} parent=0
    #allocation2 [shape = 'u8[8192]{0}', space=vmem, size = 0x2000, scoped, tag = 'input window, operand 0, single buffered']
    #allocation3 [shape = 's32[1]{0}', space=sflag, size = 0x4, scoped, tag = 'scoped memory for tpu_custom_call.1']
    #allocation4 [shape = 's32[1]{0}', space=sflag, size = 0x4, scoped, tag = 'scoped memory for tpu_custom_call.1']
    #allocation5 [shape = 'u8[8192]{0}', space=vmem, size = 0x2000, scoped, tag = 'output window, operand 0, single buffered']
    %6 = vsyncpa [#allocation3], 0
    %7 = vsyncpa [#allocation4], 0
    // Predicated region
    $region2: #{tpu_custom_call.1} parent=1 // pred_check
      _
    $region3: #{tpu_custom_call.1} parent=1 // pred_check_branch
      %9 = sbr.rel (0) target = $region5
    $region4: #{tpu_custom_call.1} parent=1 // pred_region
      %11 = vsyncadd [#allocation3], 0
      %s13 = sshll.u32 %s0, 4
      %s14 = int_to_ptr.hbm [resolvable:$true] %s13
      %s15 = sshll.u32 [#allocation2], 4
      %s16 = int_to_ptr.vmem [resolvable:$true] %s15
      %18 = dma.hbm_to_vmem [thread:$0]  %s14, 256, %s16, [#allocation3]
    $region5: #{tpu_custom_call.1} parent=1 // pred_fallthru
      _
    // Predicated region
    $region6: #{tpu_custom_call.1} parent=1 // pred_check
      _
    $region7: #{tpu_custom_call.1} parent=1 // pred_check_branch
      %20 = sbr.rel (0) target = $region9
    $region8: #{tpu_custom_call.1} parent=1 // pred_region
      %22 = dma.done [#allocation3], 256
    $region9: #{tpu_custom_call.1} parent=1 // pred_fallthru
      _
    %v23 = vld [vmem:[#allocation2] sm:$0xff]
    %v24 = vld [vmem:[#allocation2 + $0x8] sm:$0xff]
    %vm25 = vcmp.le.f32.partialorder %v23, 1e-07
    %vm26 = vcmp.le.f32.partialorder %v24, 1e-07
    %v27 = vsel %vm25, 0.0, %v23
    %v28 = vsel %vm26, 0.0, %v24
    %29 = vst [vmem:[#allocation5] sm:$0xff] %v27
    %30 = vst [vmem:[#allocation5 + $0x8] sm:$0xff] %v28
    // Predicated region
    $region10: #{tpu_custom_call.1} parent=1 // pred_check
      _
    $region11: #{tpu_custom_call.1} parent=1 // pred_check_branch
      %32 = sbr.rel (0) target = $region13
    $region12: #{tpu_custom_call.1} parent=1 // pred_region
      %34 = vsyncadd [#allocation4], 0
      %s36 = sshll.u32 [#allocation5], 4
      %s37 = int_to_ptr.vmem [resolvable:$true] %s36
      %s38 = sshll.u32 %s1, 4
      %s39 = int_to_ptr.hbm [resolvable:$true] %s38
      %41 = dma.vmem_to_hbm [thread:$0]  %s37, 256, %s39, [#allocation4]
    $region13: #{tpu_custom_call.1} parent=1 // pred_fallthru
      _
    // Predicated region
    $region14: #{tpu_custom_call.1} parent=1 // pred_check
      _
    $region15: #{tpu_custom_call.1} parent=1 // pred_check_branch
      %43 = sbr.rel (0) target = $region17
    $region16: #{tpu_custom_call.1} parent=1 // pred_region
      %45 = dma.done [#allocation4], 256
    $region17: #{tpu_custom_call.1} parent=1 // pred_fallthru
      _
    %46 = vsyncpa [#allocation3], 1
    %47 = vsyncpa [#allocation4], 1

</llo_original>
